<compile_context>
chip_gen: v6e
topology: v6e:2x2x1
jax: 0.10.0
libtpu: 0.0.40
codegen_flags: <defaults>
</compile_context>

<pallas_src>
import functools

import jax
import jax.numpy as jnp
from jax.experimental import pallas as pl
from jax.experimental.pallas import tpu as pltpu


def _round_up(x, m):
    return (x + m - 1) // m * m


# ------------------------------------------------------------------------------ kernel
def _attention_kernel(x_ref, w1_ref, b1_ref, w2_ref, b2_ref, o_ref, *, inv_hw):
    """Fused channel attention for one batch element.

    x_ref: (HWp, Cp) activation tile (spatial rows, channels on lanes).
    """
    x = x_ref[...]                                                   # (HWp, Cp)
    # AdaptiveAvgPool2d(1): mean over spatial (padded rows are zero, divide by true HW).
    pooled = jnp.sum(x, axis=0, keepdims=True) * inv_hw              # (1, Cp)
    # Conv2d(C, C//16, 1) on a 1x1 map == channel matmul.
    h = jnp.dot(pooled, w1_ref[...], preferred_element_type=jnp.float32) + b1_ref[...]
    h = jnp.maximum(h, 0.0)                                          # ReLU
    # Conv2d(C//16, C, 1)
    z = jnp.dot(h, w2_ref[...], preferred_element_type=jnp.float32) + b2_ref[...]
    att = 1.0 / (1.0 + jnp.exp(-z))                                  # Sigmoid (EUP)
    # x * channel_att(x): broadcast per-channel gate over the spatial rows.
    o_ref[...] = x * att


# -------------------------------------------------------------------------- parameters
def make_params(key, in_features):
    """Synthetic Conv2d(1x1) weights, stored as (in, out) matmul matrices."""
    hidden = in_features // 16
    k1, k2, k3, k4 = jax.random.split(key, 4)
    s1 = (2.0 / in_features) ** 0.5
    s2 = (2.0 / hidden) ** 0.5
    return {
        "w1": s1 * jax.random.normal(k1, (in_features, hidden), jnp.float32),
        "b1": 0.05 * jax.random.normal(k2, (hidden,), jnp.float32),
        "w2": s2 * jax.random.normal(k3, (hidden, in_features), jnp.float32),
        "b2": 0.05 * jax.random.normal(k4, (in_features,), jnp.float32),
    }


def prep_padded_params(params):
    """One-time zero-padding of weights/biases to (8,128)-aligned, lane-dense tiles."""
    c, hidden = params["w1"].shape
    cp = _round_up(c, 128)
    hp = _round_up(hidden, 128)
    return {
        "w1": jnp.pad(params["w1"], ((0, cp - c), (0, hp - hidden))),            # (Cp, Hp)
        "b1": jnp.pad(params["b1"].reshape(1, -1), ((0, 0), (0, hp - hidden))),  # (1, Hp)
        "w2": jnp.pad(params["w2"], ((0, hp - hidden), (0, cp - c))),            # (Hp, Cp)
        "b2": jnp.pad(params["b2"].reshape(1, -1), ((0, 0), (0, cp - c))),       # (1, Cp)
    }


# ----------------------------------------------------------------------------- forward
def attention_block(x_nchw, pp):
    """forward(x) = x * channel_att(x), input/output in PyTorch NCHW layout."""
    b, c, h, w = x_nchw.shape
    hw = h * w
    cp = pp["w2"].shape[1]
    hp = pp["w1"].shape[1]
    hwp = _round_up(hw, 8)

    # NCHW -> (B, HW, C): channels on the fast 128-lane axis; pad once.
    x = jnp.transpose(x_nchw, (0, 2, 3, 1)).reshape(b, hw, c).astype(jnp.float32)
    xp = jnp.pad(x, ((0, 0), (0, hwp - hw), (0, cp - c)))

    # TODO(synk): for feature maps too large to keep a full (HW, C) tile in VMEM,
    # split the pooling into a two-pass reduction over spatial tiles.
    kernel = functools.partial(_attention_kernel, inv_hw=1.0 / hw)
    out = pl.pallas_call(
        kernel,
        out_shape=jax.ShapeDtypeStruct((b, hwp, cp), jnp.float32),
        grid=(b,),
        in_specs=[
            pl.BlockSpec((None, hwp, cp), lambda i: (i, 0, 0)),   # x: one batch / step
            pl.BlockSpec((cp, hp), lambda i: (0, 0)),             # w1
            pl.BlockSpec((1, hp), lambda i: (0, 0)),              # b1
            pl.BlockSpec((hp, cp), lambda i: (0, 0)),             # w2
            pl.BlockSpec((1, cp), lambda i: (0, 0)),              # b2
        ],
        out_specs=pl.BlockSpec((None, hwp, cp), lambda i: (i, 0, 0)),
        compiler_params=pltpu.CompilerParams(
            dimension_semantics=("parallel",),
        ),
    )(xp, pp["w1"], pp["b1"], pp["w2"], pp["b2"])

    out = out[:, :hw, :c].reshape(b, h, w, c)
    return jnp.transpose(out, (0, 3, 1, 2))


# ---------------------------------------------------------------------- pure-JAX check
def attention_block_ref(x_nchw, params):
    pooled = jnp.mean(x_nchw, axis=(2, 3))                            # (B, C)
    h = jnp.maximum(pooled @ params["w1"] + params["b1"], 0.0)
    z = h @ params["w2"] + params["b2"]
    att = jax.nn.sigmoid(z)
    return x_nchw * att[:, :, None, None]


if __name__ == "__main__":
    B, C, H, W = 2, 64, 8, 8          # in_features=64 -> hidden=4
    root = jax.random.PRNGKey(0)
    pkey, xkey = jax.random.split(root)

    params = make_params(pkey, C)
    padded = prep_padded_params(params)
    x = jax.random.normal(xkey, (B, C, H, W), jnp.float32)

    out = jax.jit(attention_block)(x, padded)
    out = jax.block_until_ready(out)

    assert out.shape == (B, C, H, W), out.shape
    assert bool(jnp.all(jnp.isfinite(out)))
    ref = attention_block_ref(x, params)
    assert bool(jnp.allclose(out, ref, rtol=1e-5, atol=1e-5)), \
        float(jnp.max(jnp.abs(out - ref)))
    print("KERNEL_OK")
</pallas_src>

<mosaic_0001>
module attributes {stable_mosaic.version = 11 : i64} {
  func.func @_attention_kernel(%arg0: i32, %arg1: memref<1x64x128xf32, #tpu.memory_space<vmem>>, %arg2: memref<128x128xf32, #tpu.memory_space<vmem>>, %arg3: memref<1x128xf32, #tpu.memory_space<vmem>>, %arg4: memref<128x128xf32, #tpu.memory_space<vmem>>, %arg5: memref<1x128xf32, #tpu.memory_space<vmem>>, %arg6: memref<1x64x128xf32, #tpu.memory_space<vmem>>) attributes {dimension_semantics = [#tpu.dimension_semantics<parallel>], iteration_bounds = array<i64: 2>, scalar_prefetch = 0 : i64, scratch_operands = 0 : i64, tpu.core_type = #tpu.core_type<tc>, window_params = [{transform_indices = @transform_0, window_bounds = array<i64: 1, 64, 128>}, {pipeline_mode = #tpu.pipeline_mode<synchronous>, transform_indices = @transform_1, window_bounds = array<i64: 128, 128>}, {pipeline_mode = #tpu.pipeline_mode<synchronous>, transform_indices = @transform_2, window_bounds = array<i64: 1, 128>}, {pipeline_mode = #tpu.pipeline_mode<synchronous>, transform_indices = @transform_3, window_bounds = array<i64: 128, 128>}, {pipeline_mode = #tpu.pipeline_mode<synchronous>, transform_indices = @transform_4, window_bounds = array<i64: 1, 128>}, {transform_indices = @transform_5, window_bounds = array<i64: 1, 64, 128>}]} {
    %c0 = arith.constant 0 : index
    %c0_0 = arith.constant 0 : index
    %c0_1 = arith.constant 0 : index
    %0 = vector.load %arg1[%c0, %c0_0, %c0_1] : memref<1x64x128xf32, #tpu.memory_space<vmem>>, vector<1x64x128xf32>
    %1 = vector.shape_cast %0 : vector<1x64x128xf32> to vector<64x128xf32>
    %cst = arith.constant dense<0.000000e+00> : vector<128xf32>
    %2 = vector.multi_reduction <add>, %1, %cst [0] : vector<64x128xf32> to vector<128xf32>
    %3 = vector.shape_cast %2 : vector<128xf32> to vector<1x128xf32>
    %cst_2 = arith.constant 1.562500e-02 : f32
    %4 = vector.broadcast %cst_2 : f32 to vector<1x128xf32>
    %5 = arith.mulf %3, %4 : vector<1x128xf32>
    %c0_3 = arith.constant 0 : index
    %c0_4 = arith.constant 0 : index
    %6 = vector.load %arg2[%c0_3, %c0_4] : memref<128x128xf32, #tpu.memory_space<vmem>>, vector<128x128xf32>
    %cst_5 = arith.constant dense<0.000000e+00> : vector<1x128xf32>
    %7 = tpu.matmul %5, %6, %cst_5 {dimension_numbers = #tpu.dot_dimension_numbers<[1], [0], [0], [1], [0, 0, 1, 1], [], []>} : vector<1x128xf32>, vector<128x128xf32>, vector<1x128xf32> -> vector<1x128xf32>
    %c0_6 = arith.constant 0 : index
    %c0_7 = arith.constant 0 : index
    %8 = vector.load %arg3[%c0_6, %c0_7] : memref<1x128xf32, #tpu.memory_space<vmem>>, vector<1x128xf32>
    %9 = arith.addf %7, %8 : vector<1x128xf32>
    %cst_8 = arith.constant 0.000000e+00 : f32
    %10 = vector.broadcast %cst_8 : f32 to vector<1x128xf32>
    %11 = arith.maximumf %9, %10 : vector<1x128xf32>
    %c0_9 = arith.constant 0 : index
    %c0_10 = arith.constant 0 : index
    %12 = vector.load %arg4[%c0_9, %c0_10] : memref<128x128xf32, #tpu.memory_space<vmem>>, vector<128x128xf32>
    %cst_11 = arith.constant dense<0.000000e+00> : vector<1x128xf32>
    %13 = tpu.matmul %11, %12, %cst_11 {dimension_numbers = #tpu.dot_dimension_numbers<[1], [0], [0], [1], [0, 0, 1, 1], [], []>} : vector<1x128xf32>, vector<128x128xf32>, vector<1x128xf32> -> vector<1x128xf32>
    %c0_12 = arith.constant 0 : index
    %c0_13 = arith.constant 0 : index
    %14 = vector.load %arg5[%c0_12, %c0_13] : memref<1x128xf32, #tpu.memory_space<vmem>>, vector<1x128xf32>
    %15 = arith.addf %13, %14 : vector<1x128xf32>
    %cst_14 = arith.constant 0.000000e+00 : f32
    %16 = vector.broadcast %cst_14 : f32 to vector<1x128xf32>
    %17 = arith.subf %16, %15 : vector<1x128xf32>
    %18 = math.exp %17 : vector<1x128xf32>
    %cst_15 = arith.constant 1.000000e+00 : f32
    %19 = vector.broadcast %cst_15 : f32 to vector<1x128xf32>
    %20 = arith.addf %19, %18 : vector<1x128xf32>
    %cst_16 = arith.constant 1.000000e+00 : f32
    %21 = vector.broadcast %cst_16 : f32 to vector<1x128xf32>
    %22 = arith.divf %21, %20 : vector<1x128xf32>
    %23 = vector.broadcast %22 : vector<1x128xf32> to vector<64x128xf32>
    %24 = arith.mulf %1, %23 : vector<64x128xf32>
    %c0_17 = arith.constant 0 : index
    %c0_18 = arith.constant 0 : index
    %c0_19 = arith.constant 0 : index
    %25 = vector.load %arg6[%c0_17, %c0_18, %c0_19] : memref<1x64x128xf32, #tpu.memory_space<vmem>>, vector<1x64x128xf32>
    %26 = vector.shape_cast %25 : vector<1x64x128xf32> to vector<64x128xf32>
    %27 = vector.shape_cast %24 : vector<64x128xf32> to vector<1x64x128xf32>
    tpu.vector_store %arg6[%c0_17, %c0_18, %c0_19], %27 {strides = array<i32>} : memref<1x64x128xf32, #tpu.memory_space<vmem>>, vector<1x64x128xf32>,
    return
  }
  func.func @transform_0(%arg0: i32) -> (i32, i32, i32) {
    %c0_i32 = arith.constant 0 : i32
    %c0_i32_0 = arith.constant 0 : i32
    %c0_i32_1 = arith.constant 0 : i32
    return %arg0, %c0_i32, %c0_i32_0 : i32, i32, i32
  }
  func.func @transform_1(%arg0: i32) -> (i32, i32) {
    %c0_i32 = arith.constant 0 : i32
    %c0_i32_0 = arith.constant 0 : i32
    %c0_i32_1 = arith.constant 0 : i32
    return %c0_i32, %c0_i32_0 : i32, i32
  }
  func.func @transform_2(%arg0: i32) -> (i32, i32) {
    %c0_i32 = arith.constant 0 : i32
    %c0_i32_0 = arith.constant 0 : i32
    %c0_i32_1 = arith.constant 0 : i32
    return %c0_i32, %c0_i32_0 : i32, i32
  }
  func.func @transform_3(%arg0: i32) -> (i32, i32) {
    %c0_i32 = arith.constant 0 : i32
    %c0_i32_0 = arith.constant 0 : i32
    %c0_i32_1 = arith.constant 0 : i32
    return %c0_i32, %c0_i32_0 : i32, i32
  }
  func.func @transform_4(%arg0: i32) -> (i32, i32) {
    %c0_i32 = arith.constant 0 : i32
    %c0_i32_0 = arith.constant 0 : i32
    %c0_i32_1 = arith.constant 0 : i32
    return %c0_i32, %c0_i32_0 : i32, i32
  }
  func.func @transform_5(%arg0: i32) -> (i32, i32, i32) {
    %c0_i32 = arith.constant 0 : i32
    %c0_i32_0 = arith.constant 0 : i32
    %c0_i32_1 = arith.constant 0 : i32
    return %arg0, %c0_i32, %c0_i32_0 : i32, i32, i32
  }
}

</mosaic_0001>

<llo_original>
// kernel: attention_block.1
$region0: #{attention_block.1}
  #allocation0 [shape = 'u32[]', space=smem, size = 0x4, offset = 0x4, fixed_abs, tag = 'smem constant byte address 0x4 - core index']
  #allocation1 [shape = 'u32[144,128]{1,0:T(1,128)}', space=vmem, size = 0x12000, scoped, tag = 'internal scratch']
  %s0 = inlined_call_operand.vmem [shape: f32[2,64,128], index: 0, kind: input, shape index: {}]
  %s1 = inlined_call_operand.vmem [shape: f32[128,128], index: 1, kind: input, shape index: {}]
  %s2 = inlined_call_operand.vmem [shape: f32[1,128], index: 2, kind: input, shape index: {}]
  %s3 = inlined_call_operand.vmem [shape: f32[128,128], index: 3, kind: input, shape index: {}]
  %s4 = inlined_call_operand.vmem [shape: f32[1,128], index: 4, kind: input, shape index: {}]
  %s5 = inlined_call_operand.vmem [shape: f32[2,64,128], index: 5, kind: output, shape index: {}]
  %s6 = sld [smem:[#allocation0]]
  $region53: #{attention_block.1} parent=0
    _
  %s8 = ssub.s32 1, %s6
  %s9 = scalar_select 0, %s8, %s6
  loop: start=0, step=1, limit=4
  $region2: #{attention_block.1} parent=0 // loop_pre_header
    _
  $region3: #{attention_block.1} parent=0 // loop_header
    %s11 = sphi 0, %s15
    %p12 = scmp.ge.s32.totalorder %s11, 4
    %s21 = sphi 0, %s23
    %s24 = sphi 0, %s21
    %s25 = sphi 0, %s24
    %s41 = sphi 0, %s25
    %s45 = sphi 0, %s45
    %s47 = sphi 0, %s45
    %s48 = sphi 0, %s47
    %s62 = sphi 0, %s48
    %s66 = sphi 0, %s66
    %s68 = sphi 0, %s66
    %s69 = sphi 0, %s68
    %s83 = sphi 0, %s69
    %s87 = sphi 0, %s87
    %s89 = sphi 0, %s87
    %s90 = sphi 0, %s89
    %s104 = sphi 0, %s90
    %s108 = sphi 0, %s108
    %s110 = sphi 0, %s108
    %s111 = sphi 0, %s110
    %s125 = sphi 0, %s111
    %s131 = sphi 0, %s133
    %s134 = sphi 0, %s131
    %s135 = sphi 0, %s134
    %s151 = sphi 0, %s135
  $region4: #{attention_block.1} parent=0 // loop_header_branch
    %14 = sbr.rel (%p12) target = $region8
  $region5: #{attention_block.1} parent=0 // loop_body
    %s16 = ssub.s32 %s11, 1
    %s17 = ssub.s32 %s11, 2
    %s18 = sadd.s32 %s11, 1
    %s19 = ssub.s32 %s11, %s18
    %p20 = scmp.eq.s32.totalorder %s19, 0
    %s22 = sadd.s32 %s21, 1
    %s23 = scalar_select %p20, %s21, %s22
    %p26 = pneg %p20
    %p27 = scmp.eq.s32.totalorder %s11, 1
    %p28 = por %p26, %p27
    %p29 = scmp.ne.s32.totalorder %s21, %s24
    %p30 = scmp.eq.s32.totalorder %s11, 0
    %p31 = por %p29, %p30
    %p32 = scmp.ne.s32.totalorder %s21, %s24
    %p33 = scmp.eq.s32.totalorder %s16, 1
    %p34 = por %p32, %p33
    %p35 = scmp.ne.s32.totalorder %s24, %s25
    %p36 = scmp.eq.s32.totalorder %s16, 0
    %p37 = por %p35, %p36
    %p38 = scmp.ne.s32.totalorder %s24, %s25
    %p39 = scmp.eq.s32.totalorder %s17, 1
    %p40 = por %p38, %p39
    %p42 = scmp.ne.s32.totalorder %s25, %s41
    %p43 = scmp.eq.s32.totalorder %s17, 0
    %p44 = por %p42, %p43
    %s46 = sadd.s32 %s45, 1
    %p49 = scmp.eq.s32.totalorder %s11, 1
    %p50 = scmp.ne.s32.totalorder %s45, %s47
    %p51 = scmp.eq.s32.totalorder %s11, 0
    %p52 = por %p50, %p51
    %p53 = scmp.ne.s32.totalorder %s45, %s47
    %p54 = scmp.eq.s32.totalorder %s16, 1
    %p55 = por %p53, %p54
    %p56 = scmp.ne.s32.totalorder %s47, %s48
    %p57 = scmp.eq.s32.totalorder %s16, 0
    %p58 = por %p56, %p57
    %p59 = scmp.ne.s32.totalorder %s47, %s48
    %p60 = scmp.eq.s32.totalorder %s17, 1
    %p61 = por %p59, %p60
    %p63 = scmp.ne.s32.totalorder %s48, %s62
    %p64 = scmp.eq.s32.totalorder %s17, 0
    %p65 = por %p63, %p64
    %s67 = sadd.s32 %s66, 1
    %p70 = scmp.eq.s32.totalorder %s11, 1
    %p71 = scmp.ne.s32.totalorder %s66, %s68
    %p72 = scmp.eq.s32.totalorder %s11, 0
    %p73 = por %p71, %p72
    %p74 = scmp.ne.s32.totalorder %s66, %s68
    %p75 = scmp.eq.s32.totalorder %s16, 1
    %p76 = por %p74, %p75
    %p77 = scmp.ne.s32.totalorder %s68, %s69
    %p78 = scmp.eq.s32.totalorder %s16, 0
    %p79 = por %p77, %p78
    %p80 = scmp.ne.s32.totalorder %s68, %s69
    %p81 = scmp.eq.s32.totalorder %s17, 1
    %p82 = por %p80, %p81
    %p84 = scmp.ne.s32.totalorder %s69, %s83
    %p85 = scmp.eq.s32.totalorder %s17, 0
    %p86 = por %p84, %p85
    %s88 = sadd.s32 %s87, 1
    %p91 = scmp.eq.s32.totalorder %s11, 1
    %p92 = scmp.ne.s32.totalorder %s87, %s89
    %p93 = scmp.eq.s32.totalorder %s11, 0
    %p94 = por %p92, %p93
    %p95 = scmp.ne.s32.totalorder %s87, %s89
    %p96 = scmp.eq.s32.totalorder %s16, 1
    %p97 = por %p95, %p96
    %p98 = scmp.ne.s32.totalorder %s89, %s90
    %p99 = scmp.eq.s32.totalorder %s16, 0
    %p100 = por %p98, %p99
    %p101 = scmp.ne.s32.totalorder %s89, %s90
    %p102 = scmp.eq.s32.totalorder %s17, 1
    %p103 = por %p101, %p102
    %p105 = scmp.ne.s32.totalorder %s90, %s104
    %p106 = scmp.eq.s32.totalorder %s17, 0
    %p107 = por %p105, %p106
    %s109 = sadd.s32 %s108, 1
    %p112 = scmp.eq.s32.totalorder %s11, 1
    %p113 = scmp.ne.s32.totalorder %s108, %s110
    %p114 = scmp.eq.s32.totalorder %s11, 0
    %p115 = por %p113, %p114
    %p116 = scmp.ne.s32.totalorder %s108, %s110
    %p117 = scmp.eq.s32.totalorder %s16, 1
    %p118 = por %p116, %p117
    %p119 = scmp.ne.s32.totalorder %s110, %s111
    %p120 = scmp.eq.s32.totalorder %s16, 0
    %p121 = por %p119, %p120
    %p122 = scmp.ne.s32.totalorder %s110, %s111
    %p123 = scmp.eq.s32.totalorder %s17, 1
    %p124 = por %p122, %p123
    %p126 = scmp.ne.s32.totalorder %s111, %s125
    %p127 = scmp.eq.s32.totalorder %s17, 0
    %p128 = por %p126, %p127
    %s129 = ssub.s32 %s11, %s18
    %p130 = scmp.eq.s32.totalorder %s129, 0
    %s132 = sadd.s32 %s131, 1
    %s133 = scalar_select %p130, %s131, %s132
    %p136 = pneg %p130
    %p137 = scmp.eq.s32.totalorder %s11, 1
    %p138 = por %p136, %p137
    %p139 = scmp.ne.s32.totalorder %s131, %s134
    %p140 = scmp.eq.s32.totalorder %s11, 0
    %p141 = por %p139, %p140
    %p142 = scmp.ne.s32.totalorder %s131, %s134
    %p143 = scmp.eq.s32.totalorder %s16, 1
    %p144 = por %p142, %p143
    %p145 = scmp.ne.s32.totalorder %s134, %s135
    %p146 = scmp.eq.s32.totalorder %s16, 0
    %p147 = por %p145, %p146
    %p148 = scmp.ne.s32.totalorder %s134, %s135
    %p149 = scmp.eq.s32.totalorder %s17, 1
    %p150 = por %p148, %p149
    %p152 = scmp.ne.s32.totalorder %s135, %s151
    %p153 = scmp.eq.s32.totalorder %s17, 0
    %p154 = por %p152, %p153
    %p155 = scmp.le.s32.totalorder 1, %s11
    %p156 = scmp.lt.s32.totalorder %s11, 3
    %p157 = pnand %p155, %p156
    %p158 = pneg %p157
    // Predicated region
    $region9: #{attention_block.1} parent=5 // pred_check
      _
    $region10: #{attention_block.1} parent=5 // pred_check_branch
      %160 = sbr.rel (%p157) target = $region12
    $region11: #{attention_block.1} parent=5 // pred_region
      %s161 = ssub.s32 %s11, 1
      // Predicated region
      $region13: #{attention_block.1} parent=11 // pred_check
        %p162 = pneg %p58
      $region14: #{attention_block.1} parent=11 // pred_check_branch
        %164 = sbr.rel (%p162) target = $region16
      $region15: #{attention_block.1} parent=11 // pred_region
        _
      $region16: #{attention_block.1} parent=11 // pred_fallthru
        _
      // Predicated region
      $region17: #{attention_block.1} parent=11 // pred_check
        %p165 = pneg %p79
      $region18: #{attention_block.1} parent=11 // pred_check_branch
        %167 = sbr.rel (%p165) target = $region20
      $region19: #{attention_block.1} parent=11 // pred_region
        _
      $region20: #{attention_block.1} parent=11 // pred_fallthru
        _
      // Predicated region
      $region21: #{attention_block.1} parent=11 // pred_check
        %p168 = pneg %p100
      $region22: #{attention_block.1} parent=11 // pred_check_branch
        %170 = sbr.rel (%p168) target = $region24
      $region23: #{attention_block.1} parent=11 // pred_region
        _
      $region24: #{attention_block.1} parent=11 // pred_fallthru
        _
      // Predicated region
      $region25: #{attention_block.1} parent=11 // pred_check
        %p171 = pneg %p121
      $region26: #{attention_block.1} parent=11 // pred_check_branch
        %173 = sbr.rel (%p171) target = $region28
      $region27: #{attention_block.1} parent=11 // pred_region
        _
      $region28: #{attention_block.1} parent=11 // pred_fallthru
        _
    $region12: #{attention_block.1} parent=5 // pred_fallthru
      _
    %p174 = scmp.lt.s32.totalorder %s11, 2
    // Predicated region
    $region29: #{attention_block.1} parent=5 // pred_check
      %p175 = pneg %p174
    $region30: #{attention_block.1} parent=5 // pred_check_branch
      %177 = sbr.rel (%p175) target = $region32
    $region31: #{attention_block.1} parent=5 // pred_region
      // Predicated region
      $region33: #{attention_block.1} parent=31 // pred_check
        %p178 = pneg %p31
      $region34: #{attention_block.1} parent=31 // pred_check_branch
        %180 = sbr.rel (%p178) target = $region36
      $region35: #{attention_block.1} parent=31 // pred_region
        %p181 = scmp.lt.s32.totalorder %s11, 1
        %s182 = scalar_select %p181, %s11, 1
        %s183 = smul.addr %s182, 8
        %s184 = smul.addr %s183, 8
        %s185 = scalar_lea.vmem %s0, %s184
      $region36: #{attention_block.1} parent=31 // pred_fallthru
        _
    $region32: #{attention_block.1} parent=5 // pred_fallthru
      _
    %p186 = scmp.le.s32.totalorder 1, %s11
    %p187 = scmp.lt.s32.totalorder %s11, 3
    %p188 = pnand %p186, %p187
    %p189 = pneg %p188
    // Predicated region
    $region37: #{attention_block.1} parent=5 // pred_check
      _
    $region38: #{attention_block.1} parent=5 // pred_check_branch
      %191 = sbr.rel (%p188) target = $region40
    $region39: #{attention_block.1} parent=5 // pred_region
      %s192 = ssub.s32 %s11, 1
      %p193 = scmp.lt.s32.totalorder %s16, 1
      %s194 = scalar_select %p193, %s16, 1
      %s195 = smul.addr %s194, 8
      %s196 = smul.addr %s195, 8
      %s197 = scalar_lea.vmem %s0, %s196
      %p198 = pneg %p37
      %p199 = pneg %p34
      %p200 = pneg %p58
      %p201 = pneg %p55
      %p202 = pneg %p79
      %p203 = pneg %p76
      %p204 = pneg %p100
      %p205 = pneg %p97
      %p206 = pneg %p121
      %p207 = pneg %p118
      %p208 = pneg %p147
      %p209 = pneg %p144
      %p210 = scmp.lt.s32.totalorder %s16, 1
      %s211 = scalar_select %p210, %s16, 1
      %s212 = smul.addr %s211, 8
      %s213 = smul.addr %s212, 8
      %s214 = scalar_lea.vmem %s5, %s213
      %p215 = scmp.lt.s32.totalorder %s16, 1
      %s216 = scalar_select %p215, %s16, 1
      %s217 = smul.addr %s216, 8
      %s218 = smul.addr %s217, 8
      %s219 = scalar_lea.vmem %s0, %s218
      %p220 = scmp.lt.s32.totalorder %s16, 1
      %s221 = scalar_select %p220, %s16, 1
      %s222 = smul.addr %s221, 8
      %s223 = smul.addr %s222, 8
      %s224 = scalar_lea.vmem %s5, %s223
      %v225 = vld [vmem:[%s219] sm:$0xff]
      %v226 = vld [vmem:[%s219 + $0x8] sm:$0xff]
      %v227 = vld [vmem:[%s219 + $0x10] sm:$0xff]
      %v228 = vld [vmem:[%s219 + $0x18] sm:$0xff]
      %v229 = vld [vmem:[%s219 + $0x20] sm:$0xff]
      %v230 = vld [vmem:[%s219 + $0x28] sm:$0xff]
      %v231 = vld [vmem:[%s219 + $0x30] sm:$0xff]
      %v232 = vld [vmem:[%s219 + $0x38] sm:$0xff]
      %v233 = vadd.f32 %v225, %v226
      %v234 = vadd.f32 %v233, %v227
      %v235 = vadd.f32 %v234, %v228
      %v236 = vadd.f32 %v235, %v229
      %v237 = vadd.f32 %v236, %v230
      %v238 = vadd.f32 %v237, %v231
      %v239 = vadd.f32 %v238, %v232
      %v240 = vrot.slane %v239, 4
      %v241 = vadd.f32 %v239, %v240
      %v242 = vrot.slane %v241, 2
      %v243 = vadd.f32 %v241, %v242
      %v244 = vrot.slane %v243, 1
      %v245 = vadd.f32 %v243, %v244
      %v246 = vmul.f32 %v245, 0.015625
      %v247 = vld [vmem:[%s1] sm:$0xff]
      %v248 = vld [vmem:[%s1 + $0x8] sm:$0xff]
      %v249 = vld [vmem:[%s1 + $0x10] sm:$0xff]
      %v250 = vld [vmem:[%s1 + $0x18] sm:$0xff]
      %v251 = vld [vmem:[%s1 + $0x20] sm:$0xff]
      %v252 = vld [vmem:[%s1 + $0x28] sm:$0xff]
      %v253 = vld [vmem:[%s1 + $0x30] sm:$0xff]
      %v254 = vld [vmem:[%s1 + $0x38] sm:$0xff]
      %v255 = vld [vmem:[%s1 + $0x40] sm:$0xff]
      %v256 = vld [vmem:[%s1 + $0x48] sm:$0xff]
      %v257 = vld [vmem:[%s1 + $0x50] sm:$0xff]
      %v258 = vld [vmem:[%s1 + $0x58] sm:$0xff]
      %v259 = vld [vmem:[%s1 + $0x60] sm:$0xff]
      %v260 = vld [vmem:[%s1 + $0x68] sm:$0xff]
      %v261 = vld [vmem:[%s1 + $0x70] sm:$0xff]
      %v262 = vld [vmem:[%s1 + $0x78] sm:$0xff]
      %v263 = vld [vmem:[%s2] sm:$0x1]
      %264 = vmatprep.subr.mxu0 0.0
      %265 = vmatpush1.msra.mxu0 %v262
      %266 = vmatprep.subr.mxu0 0.0
      %267 = vmatpush1.msra.mxu0 %v261
      %268 = vmatprep.subr.mxu0 0.0
      %269 = vmatpush1.msra.mxu0 %v260
      %270 = vmatprep.subr.mxu0 0.0
      %271 = vmatpush1.msra.mxu0 %v259
      %272 = vmatprep.subr.mxu0 0.0
      %273 = vmatpush1.msra.mxu0 %v258
      %274 = vmatprep.subr.mxu0 0.0
      %275 = vmatpush1.msra.mxu0 %v257
      %276 = vmatprep.subr.mxu0 0.0
      %277 = vmatpush1.msra.mxu0 %v256
      %278 = vmatprep.subr.mxu0 0.0
      %279 = vmatpush1.msra.mxu0 %v255
      %280 = vmatprep.subr.mxu0 0.0
      %281 = vmatpush1.msra.mxu0 %v254
      %282 = vmatprep.subr.mxu0 0.0
      %283 = vmatpush1.msra.mxu0 %v253
      %284 = vmatprep.subr.mxu0 0.0
      %285 = vmatpush1.msra.mxu0 %v252
      %286 = vmatprep.subr.mxu0 0.0
      %287 = vmatpush1.msra.mxu0 %v251
      %288 = vmatprep.subr.mxu0 0.0
      %289 = vmatpush1.msra.mxu0 %v250
      %290 = vmatprep.subr.mxu0 0.0
      %291 = vmatpush1.msra.mxu0 %v249
      %292 = vmatprep.subr.mxu0 0.0
      %293 = vmatpush1.msra.mxu0 %v248
      %294 = vmatprep.subr.mxu0 0.0
      %295 = vmatpush1.msra.mxu0 %v247
      %296 = vmatprep.subr.mxu0 0.0
      %297 = vmatpush2.msra.mxu0 0.0
      %298 = vmatprep.subr.mxu0 0.0
      %299 = vmatpush2.msra.mxu0 0.0
      %300 = vmatprep.subr.mxu0 0.0
      %301 = vmatpush2.msra.mxu0 0.0
      %302 = vmatprep.subr.mxu0 0.0
      %303 = vmatpush2.msra.mxu0 0.0
      %304 = vmatprep.subr.mxu0 0.0
      %305 = vmatpush2.msra.mxu0 0.0
      %306 = vmatprep.subr.mxu0 0.0
      %307 = vmatpush2.msra.mxu0 0.0
      %308 = vmatprep.subr.mxu0 0.0
      %309 = vmatpush2.msra.mxu0 0.0
      %310 = vmatprep.subr.mxu0 0.0
      %311 = vmatpush2.msra.mxu0 0.0
      %312 = vmatprep.subr.mxu0 0.0
      %313 = vmatpush2.msra.mxu0 0.0
      %314 = vmatprep.subr.mxu0 0.0
      %315 = vmatpush2.msra.mxu0 0.0
      %316 = vmatprep.subr.mxu0 0.0
      %317 = vmatpush2.msra.mxu0 0.0
      %318 = vmatprep.subr.mxu0 0.0
      %319 = vmatpush2.msra.mxu0 0.0
      %320 = vmatprep.subr.mxu0 0.0
      %321 = vmatpush2.msra.mxu0 0.0
      %322 = vmatprep.subr.mxu0 0.0
      %323 = vmatpush2.msra.mxu0 0.0
      %324 = vmatprep.subr.mxu0 0.0
      %325 = vmatpush2.msra.mxu0 0.0
      %326 = vmatprep.subr.mxu0 0.0
      %327 = vmatpush2.msra.mxu0 0.0
      %328 = vmatprep.mubr.f32.mxu0 0.0
      %329 = vmatmul.mubr.f32.gmra.mxu0 %v246
      %v330 = vpop.f32.mrf.mxu0
      %v331 = vadd.f32 %v263, %v330
      %v332 = vpop.f32.mrf.mxu0
      %333 = vdwg.mxu0
      %v334 = vmax.f32 %v331, 0.0
      %v335 = vld [vmem:[%s3] sm:$0xff]
      %v336 = vld [vmem:[%s3 + $0x8] sm:$0xff]
      %v337 = vld [vmem:[%s3 + $0x10] sm:$0xff]
      %v338 = vld [vmem:[%s3 + $0x18] sm:$0xff]
      %v339 = vld [vmem:[%s3 + $0x20] sm:$0xff]
      %v340 = vld [vmem:[%s3 + $0x28] sm:$0xff]
      %v341 = vld [vmem:[%s3 + $0x30] sm:$0xff]
      %v342 = vld [vmem:[%s3 + $0x38] sm:$0xff]
      %v343 = vld [vmem:[%s3 + $0x40] sm:$0xff]
      %v344 = vld [vmem:[%s3 + $0x48] sm:$0xff]
      %v345 = vld [vmem:[%s3 + $0x50] sm:$0xff]
      %v346 = vld [vmem:[%s3 + $0x58] sm:$0xff]
      %v347 = vld [vmem:[%s3 + $0x60] sm:$0xff]
      %v348 = vld [vmem:[%s3 + $0x68] sm:$0xff]
      %v349 = vld [vmem:[%s3 + $0x70] sm:$0xff]
      %v350 = vld [vmem:[%s3 + $0x78] sm:$0xff]
      %v351 = vld [vmem:[%s4] sm:$0x1]
      %352 = vmatprep.subr.mxu0 0.0
      %353 = vmatpush1.msra.mxu0 %v350
      %354 = vmatprep.subr.mxu0 0.0
      %355 = vmatpush1.msra.mxu0 %v349
      %356 = vmatprep.subr.mxu0 0.0
      %357 = vmatpush1.msra.mxu0 %v348
      %358 = vmatprep.subr.mxu0 0.0
      %359 = vmatpush1.msra.mxu0 %v347
      %360 = vmatprep.subr.mxu0 0.0
      %361 = vmatpush1.msra.mxu0 %v346
      %362 = vmatprep.subr.mxu0 0.0
      %363 = vmatpush1.msra.mxu0 %v345
      %364 = vmatprep.subr.mxu0 0.0
      %365 = vmatpush1.msra.mxu0 %v344
      %366 = vmatprep.subr.mxu0 0.0
      %367 = vmatpush1.msra.mxu0 %v343
      %368 = vmatprep.subr.mxu0 0.0
      %369 = vmatpush1.msra.mxu0 %v342
      %370 = vmatprep.subr.mxu0 0.0
      %371 = vmatpush1.msra.mxu0 %v341
      %372 = vmatprep.subr.mxu0 0.0
      %373 = vmatpush1.msra.mxu0 %v340
      %374 = vmatprep.subr.mxu0 0.0
      %375 = vmatpush1.msra.mxu0 %v339
      %376 = vmatprep.subr.mxu0 0.0
      %377 = vmatpush1.msra.mxu0 %v338
      %378 = vmatprep.subr.mxu0 0.0
      %379 = vmatpush1.msra.mxu0 %v337
      %380 = vmatprep.subr.mxu0 0.0
      %381 = vmatpush1.msra.mxu0 %v336
      %382 = vmatprep.subr.mxu0 0.0
      %383 = vmatpush1.msra.mxu0 %v335
      %384 = vmatprep.subr.mxu0 0.0
      %385 = vmatpush2.msra.mxu0 0.0
      %386 = vmatprep.subr.mxu0 0.0
      %387 = vmatpush2.msra.mxu0 0.0
      %388 = vmatprep.subr.mxu0 0.0
      %389 = vmatpush2.msra.mxu0 0.0
      %390 = vmatprep.subr.mxu0 0.0
      %391 = vmatpush2.msra.mxu0 0.0
      %392 = vmatprep.subr.mxu0 0.0
      %393 = vmatpush2.msra.mxu0 0.0
      %394 = vmatprep.subr.mxu0 0.0
      %395 = vmatpush2.msra.mxu0 0.0
      %396 = vmatprep.subr.mxu0 0.0
      %397 = vmatpush2.msra.mxu0 0.0
      %398 = vmatprep.subr.mxu0 0.0
      %399 = vmatpush2.msra.mxu0 0.0
      %400 = vmatprep.subr.mxu0 0.0
      %401 = vmatpush2.msra.mxu0 0.0
      %402 = vmatprep.subr.mxu0 0.0
      %403 = vmatpush2.msra.mxu0 0.0
      %404 = vmatprep.subr.mxu0 0.0
      %405 = vmatpush2.msra.mxu0 0.0
      %406 = vmatprep.subr.mxu0 0.0
      %407 = vmatpush2.msra.mxu0 0.0
      %408 = vmatprep.subr.mxu0 0.0
      %409 = vmatpush2.msra.mxu0 0.0
      %410 = vmatprep.subr.mxu0 0.0
      %411 = vmatpush2.msra.mxu0 0.0
      %412 = vmatprep.subr.mxu0 0.0
      %413 = vmatpush2.msra.mxu0 0.0
      %414 = vmatprep.subr.mxu0 0.0
      %415 = vmatpush2.msra.mxu0 0.0
      %416 = vmatprep.mubr.f32.mxu0 0.0
      %417 = vmatmul.mubr.f32.gmra.mxu0 %v334
      %v418 = vpop.f32.mrf.mxu0
      %v419 = vadd.f32 %v351, %v418
      %v420 = vpop.f32.mrf.mxu0
      %421 = vdwg.mxu0
      %v422 = vsub.f32 0.0, %v419
      %v423 = vmul.f32 %v422, 1.442695
      %v424 = vpow.pop %v423
      %v425 = vadd.f32 %v424, 1.0
      %v426 = vrcp.pop %v425
      %v427 = vmul.f32 1.0, %v426
      %v428 = vlaneseq
      %v429 = vshrl.u32 %v428, 7
      %v430 = vsub.s32 0, %v429
      %v431 = vrot.slane %v427, %v430
      %v432 = vmul.f32 %v225, %v431
      %v433 = vmul.f32 %v226, %v431
      %v434 = vmul.f32 %v227, %v431
      %v435 = vmul.f32 %v228, %v431
      %v436 = vmul.f32 %v229, %v431
      %v437 = vmul.f32 %v230, %v431
      %v438 = vmul.f32 %v231, %v431
      %v439 = vmul.f32 %v232, %v431
      %440 = vst [vmem:[%s224] sm:$0xff] %v432
      %441 = vst [vmem:[%s224 + $0x8] sm:$0xff] %v433
      %442 = vst [vmem:[%s224 + $0x10] sm:$0xff] %v434
      %443 = vst [vmem:[%s224 + $0x18] sm:$0xff] %v435
      %444 = vst [vmem:[%s224 + $0x20] sm:$0xff] %v436
      %445 = vst [vmem:[%s224 + $0x28] sm:$0xff] %v437
      %446 = vst [vmem:[%s224 + $0x30] sm:$0xff] %v438
      %447 = vst [vmem:[%s224 + $0x38] sm:$0xff] %v439
      %p448 = scmp.lt.s32.totalorder %s16, 1
      %s449 = scalar_select %p448, %s16, 1
      %s450 = smul.addr %s449, 8
      %s451 = smul.addr %s450, 8
      %s452 = scalar_lea.vmem %s5, %s451
      // Predicated region
      $region41: #{attention_block.1} parent=39 // pred_check
        %p453 = pneg %p144
      $region42: #{attention_block.1} parent=39 // pred_check_branch
        %455 = sbr.rel (%p453) target = $region44
      $region43: #{attention_block.1} parent=39 // pred_region
        _
      $region44: #{attention_block.1} parent=39 // pred_fallthru
        _
    $region40: #{attention_block.1} parent=5 // pred_fallthru
      _
    %p456 = scmp.le.s32.totalorder 2, %s11
    // Predicated region
    $region45: #{attention_block.1} parent=5 // pred_check
      %p457 = pneg %p456
    $region46: #{attention_block.1} parent=5 // pred_check_branch
      %459 = sbr.rel (%p457) target = $region48
    $region47: #{attention_block.1} parent=5 // pred_region
      %s460 = ssub.s32 %s11, 2
      // Predicated region
      $region49: #{attention_block.1} parent=47 // pred_check
        %p461 = pneg %p150
      $region50: #{attention_block.1} parent=47 // pred_check_branch
        %463 = sbr.rel (%p461) target = $region52
      $region51: #{attention_block.1} parent=47 // pred_region
        %p464 = scmp.lt.s32.totalorder %s17, 1
        %s465 = scalar_select %p464, %s17, 1
        %s466 = smul.addr %s465, 8
        %s467 = smul.addr %s466, 8
        %s468 = scalar_lea.vmem %s5, %s467
      $region52: #{attention_block.1} parent=47 // pred_fallthru
        _
    $region48: #{attention_block.1} parent=5 // pred_fallthru
      _
  $region6: #{attention_block.1} parent=0 // loop_footer
    %s15 = sadd.s32 1, %s11
  $region7: #{attention_block.1} parent=0 // loop_footer_branch
    %10 = sbr.rel target = $region3
  $region8: #{attention_block.1} parent=0 // loop_exit
    _

</llo_original>
